<compile_context>
chip_gen: v5e
topology: v5e:2x2
jax: 0.10.0
libtpu: 0.0.40
codegen_flags: <defaults>
</compile_context>

<pallas_src>
import functools

import jax
import jax.numpy as jnp
from jax.experimental import pallas as pl
from jax.experimental.pallas import tpu as pltpu


def _fsmn_kernel(x_ref, m_ref, w_ref, o_ref, pad_ref, *,
                 kernel_size, left_padding):
    # x_ref: (1, T, TD), m_ref: (1, T, 1), w_ref: (K, TD),
    # o_ref: (1, T, TD), pad_ref: (T + K - 1, TD) f32 scratch
    T = x_ref.shape[1]
    td = x_ref.shape[2]
    right_padding = kernel_size - 1 - left_padding

    x = x_ref[0].astype(jnp.float32)          # (T, TD)
    m = m_ref[0].astype(jnp.float32)          # (T, 1)
    xm = x * m                                # masked input (conv input; residual is
                                              # folded into the center tap weight)

    # Zero-padded scratch: halos once, body once.  All static offsets/sizes.
    if left_padding > 0:
        pad_ref[pl.ds(0, left_padding), :] = jnp.zeros(
            (left_padding, td), jnp.float32)
    if right_padding > 0:
        pad_ref[pl.ds(left_padding + T, right_padding), :] = jnp.zeros(
            (right_padding, td), jnp.float32)
    pad_ref[pl.ds(left_padding, T), :] = xm

    w = w_ref[...].astype(jnp.float32)        # (K, TD); center tap already has +1

    # Each tap: sublane-offset load + multiply-add.  No boundary masking needed:
    # the padding width (K - 1) covers any shift, including very short sequences.
    acc = pad_ref[pl.ds(0, T), :] * w[0][None, :]
    for k in range(1, kernel_size):
        acc = acc + pad_ref[pl.ds(k, T), :] * w[k][None, :]

    # Residual already included via the center tap; dropout is identity (eval).
    o_ref[0] = (acc * m).astype(o_ref.dtype)


def _pick_tile_d(d):
    """Largest multiple of 128 (capped at 512) dividing d, else the full d."""
    for cand in (512, 384, 256, 128):
        if d % cand == 0:
            return cand
    return d


def fsmn_block(inputs, mask, weight, *, kernel_size, fsmn_shift=0,
               mask_shfit_chunk=None):
    """inputs: (B, T, D); mask: (B, T) or (B, T, 1); weight: (D, K)
    (torch depthwise Conv1d weight (D, 1, K) squeezed)."""
    b, t, d = inputs.shape
    mask = jnp.reshape(mask, (b, t, 1)).astype(inputs.dtype)
    if mask_shfit_chunk is not None:
        mask = mask * jnp.reshape(mask_shfit_chunk, (b, t, 1)).astype(inputs.dtype)

    left_padding = (kernel_size - 1) // 2
    if fsmn_shift > 0:
        left_padding = left_padding + fsmn_shift

    # (K, D), lane-major on features; fold the residual into the center tap.
    w_kd = jnp.transpose(weight, (1, 0)).astype(jnp.float32)
    w_kd = w_kd.at[left_padding].add(1.0)

    tile_d = _pick_tile_d(d)
    n_dt = d // tile_d

    kernel = functools.partial(_fsmn_kernel,
                               kernel_size=kernel_size,
                               left_padding=left_padding)

    return pl.pallas_call(
        kernel,
        out_shape=jax.ShapeDtypeStruct((b, t, d), inputs.dtype),
        grid_spec=pltpu.PrefetchScalarGridSpec(
            num_scalar_prefetch=0,
            grid=(b, n_dt),
            in_specs=[
                pl.BlockSpec((1, t, tile_d), lambda i, j: (i, 0, j)),
                pl.BlockSpec((1, t, 1), lambda i, j: (i, 0, 0)),
                pl.BlockSpec((kernel_size, tile_d), lambda i, j: (0, j)),
            ],
            out_specs=pl.BlockSpec((1, t, tile_d), lambda i, j: (i, 0, j)),
            scratch_shapes=[
                pltpu.VMEM((t + kernel_size - 1, tile_d), jnp.float32),
            ],
        ),
        compiler_params=pltpu.CompilerParams(
            dimension_semantics=("parallel", "parallel")),
    )(inputs, mask, w_kd)


def fsmn_block_ref(inputs, mask, weight, *, kernel_size, fsmn_shift=0,
                   mask_shfit_chunk=None):
    """Pure-JAX reference mirroring the PyTorch forward (eval mode)."""
    b, t, d = inputs.shape
    mask = jnp.reshape(mask, (b, t, 1)).astype(inputs.dtype)
    if mask_shfit_chunk is not None:
        mask = mask * jnp.reshape(mask_shfit_chunk, (b, t, 1)).astype(inputs.dtype)
    xm = inputs * mask                                    # (B, T, D)
    left = (kernel_size - 1) // 2
    if fsmn_shift > 0:
        left = left + fsmn_shift
    right = kernel_size - 1 - left
    x = jnp.transpose(xm, (0, 2, 1))                      # (B, D, T)
    x = jnp.pad(x, ((0, 0), (0, 0), (left, right)))
    out = jnp.zeros((b, d, t), inputs.dtype)
    for k in range(kernel_size):
        out = out + x[:, :, k:k + t] * weight[None, :, k:k + 1]
    out = jnp.transpose(out, (0, 2, 1)) + xm
    return out * mask


if __name__ == "__main__":
    key = jax.random.PRNGKey(0)

    # --- test 1: small shapes matching the module defaults ---------------
    B, T, D = 2, 8, 32
    KERNEL_SIZE = 5
    FSMN_SHIFT = 0

    k1, k2, k3, k4 = jax.random.split(key, 4)
    inputs = jax.random.normal(k1, (B, T, D), dtype=jnp.float32)
    mask = jnp.ones((B, T), dtype=jnp.float32).at[1, -2:].set(0.0)
    weight = (jax.random.normal(k2, (D, KERNEL_SIZE), dtype=jnp.float32)
              * (1.0 / KERNEL_SIZE))

    out = fsmn_block(inputs, mask, weight,
                     kernel_size=KERNEL_SIZE, fsmn_shift=FSMN_SHIFT)
    out = jax.block_until_ready(out)
    ref = fsmn_block_ref(inputs, mask, weight,
                         kernel_size=KERNEL_SIZE, fsmn_shift=FSMN_SHIFT)
    assert out.shape == (B, T, D)
    assert jnp.allclose(out, ref, atol=1e-5, rtol=1e-5), (
        f"test1 max abs err = {jnp.max(jnp.abs(out - ref))}")

    # --- test 2: exercises D-tiling (2 lane tiles) + asymmetric padding ---
    B2, T2, D2 = 2, 16, 1024
    K2, SHIFT2 = 3, 1
    inputs2 = jax.random.normal(k3, (B2, T2, D2), dtype=jnp.float32)
    mask2 = jnp.ones((B2, T2), dtype=jnp.float32).at[0, -3:].set(0.0)
    weight2 = (jax.random.normal(k4, (D2, K2), dtype=jnp.float32) * (1.0 / K2))

    out2 = fsmn_block(inputs2, mask2, weight2, kernel_size=K2, fsmn_shift=SHIFT2)
    out2 = jax.block_until_ready(out2)
    ref2 = fsmn_block_ref(inputs2, mask2, weight2, kernel_size=K2,
                          fsmn_shift=SHIFT2)
    assert jnp.allclose(out2, ref2, atol=1e-5, rtol=1e-5), (
        f"test2 max abs err = {jnp.max(jnp.abs(out2 - ref2))}")

    print("KERNEL_OK")
</pallas_src>

<mosaic_0001>
module attributes {stable_mosaic.version = 11 : i64} {
  func.func @_fsmn_kernel(%arg0: i32, %arg1: i32, %arg2: memref<1x8x32xf32, #tpu.memory_space<vmem>>, %arg3: memref<1x8x1xf32, #tpu.memory_space<vmem>>, %arg4: memref<5x32xf32, #tpu.memory_space<vmem>>, %arg5: memref<1x8x32xf32, #tpu.memory_space<vmem>>, %arg6: memref<12x32xf32, #tpu.memory_space<vmem>>) attributes {dimension_semantics = [#tpu.dimension_semantics<parallel>, #tpu.dimension_semantics<parallel>], iteration_bounds = array<i64: 2, 1>, scalar_prefetch = 0 : i64, scratch_operands = 1 : i64, tpu.core_type = #tpu.core_type<tc>, window_params = [{transform_indices = @transform_0, window_bounds = array<i64: 1, 8, 32>}, {transform_indices = @transform_1, window_bounds = array<i64: 1, 8, 1>}, {transform_indices = @transform_2, window_bounds = array<i64: 5, 32>}, {transform_indices = @transform_3, window_bounds = array<i64: 1, 8, 32>}]} {
    %c0 = arith.constant 0 : index
    %c0_0 = arith.constant 0 : index
    %c0_1 = arith.constant 0 : index
    %0 = vector.load %arg2[%c0, %c0_0, %c0_1] : memref<1x8x32xf32, #tpu.memory_space<vmem>>, vector<1x8x32xf32>
    %1 = vector.shape_cast %0 : vector<1x8x32xf32> to vector<8x32xf32>
    %c0_2 = arith.constant 0 : index
    %c0_3 = arith.constant 0 : index
    %c0_4 = arith.constant 0 : index
    %2 = vector.load %arg3[%c0_2, %c0_3, %c0_4] : memref<1x8x1xf32, #tpu.memory_space<vmem>>, vector<1x8x1xf32>
    %3 = vector.shape_cast %2 : vector<1x8x1xf32> to vector<8x1xf32>
    %4 = vector.broadcast %3 : vector<8x1xf32> to vector<8x32xf32>
    %5 = arith.mulf %1, %4 : vector<8x32xf32>
    %cst = arith.constant 0.000000e+00 : f32
    %6 = vector.broadcast %cst : f32 to vector<2x32xf32>
    %c0_5 = arith.constant 0 : index
    %c0_6 = arith.constant 0 : index
    %7 = vector.load %arg6[%c0_5, %c0_6] : memref<12x32xf32, #tpu.memory_space<vmem>>, vector<2x32xf32>
    tpu.vector_store %arg6[%c0_5, %c0_6], %6 {strides = array<i32>} : memref<12x32xf32, #tpu.memory_space<vmem>>, vector<2x32xf32>,
    %cst_7 = arith.constant 0.000000e+00 : f32
    %8 = vector.broadcast %cst_7 : f32 to vector<2x32xf32>
    %c10 = arith.constant 10 : index
    %c0_8 = arith.constant 0 : index
    %9 = vector.load %arg6[%c10, %c0_8] : memref<12x32xf32, #tpu.memory_space<vmem>>, vector<2x32xf32>
    tpu.vector_store %arg6[%c10, %c0_8], %8 {strides = array<i32>} : memref<12x32xf32, #tpu.memory_space<vmem>>, vector<2x32xf32>,
    %c2 = arith.constant 2 : index
    %c0_9 = arith.constant 0 : index
    %10 = vector.load %arg6[%c2, %c0_9] : memref<12x32xf32, #tpu.memory_space<vmem>>, vector<8x32xf32>
    tpu.vector_store %arg6[%c2, %c0_9], %5 {strides = array<i32>} : memref<12x32xf32, #tpu.memory_space<vmem>>, vector<8x32xf32>,
    %c0_10 = arith.constant 0 : index
    %c0_11 = arith.constant 0 : index
    %11 = vector.load %arg4[%c0_10, %c0_11] : memref<5x32xf32, #tpu.memory_space<vmem>>, vector<5x32xf32>
    %c0_12 = arith.constant 0 : index
    %c0_13 = arith.constant 0 : index
    %12 = vector.load %arg6[%c0_12, %c0_13] : memref<12x32xf32, #tpu.memory_space<vmem>>, vector<8x32xf32>
    %13 = vector.extract_strided_slice %11 {offsets = [0, 0], sizes = [1, 32], strides = [1, 1]} : vector<5x32xf32> to vector<1x32xf32>
    %14 = vector.shape_cast %13 : vector<1x32xf32> to vector<32xf32>
    %15 = vector.shape_cast %14 : vector<32xf32> to vector<1x32xf32>
    %16 = vector.broadcast %15 : vector<1x32xf32> to vector<8x32xf32>
    %17 = arith.mulf %12, %16 : vector<8x32xf32>
    %c1 = arith.constant 1 : index
    %c0_14 = arith.constant 0 : index
    %18 = vector.load %arg6[%c1, %c0_14] : memref<12x32xf32, #tpu.memory_space<vmem>>, vector<8x32xf32>
    %19 = vector.extract_strided_slice %11 {offsets = [1, 0], sizes = [1, 32], strides = [1, 1]} : vector<5x32xf32> to vector<1x32xf32>
    %20 = vector.shape_cast %19 : vector<1x32xf32> to vector<32xf32>
    %21 = vector.shape_cast %20 : vector<32xf32> to vector<1x32xf32>
    %22 = vector.broadcast %21 : vector<1x32xf32> to vector<8x32xf32>
    %23 = arith.mulf %18, %22 : vector<8x32xf32>
    %24 = arith.addf %17, %23 : vector<8x32xf32>
    %c2_15 = arith.constant 2 : index
    %c0_16 = arith.constant 0 : index
    %25 = vector.load %arg6[%c2_15, %c0_16] : memref<12x32xf32, #tpu.memory_space<vmem>>, vector<8x32xf32>
    %26 = vector.extract_strided_slice %11 {offsets = [2, 0], sizes = [1, 32], strides = [1, 1]} : vector<5x32xf32> to vector<1x32xf32>
    %27 = vector.shape_cast %26 : vector<1x32xf32> to vector<32xf32>
    %28 = vector.shape_cast %27 : vector<32xf32> to vector<1x32xf32>
    %29 = vector.broadcast %28 : vector<1x32xf32> to vector<8x32xf32>
    %30 = arith.mulf %25, %29 : vector<8x32xf32>
    %31 = arith.addf %24, %30 : vector<8x32xf32>
    %c3 = arith.constant 3 : index
    %c0_17 = arith.constant 0 : index
    %32 = vector.load %arg6[%c3, %c0_17] : memref<12x32xf32, #tpu.memory_space<vmem>>, vector<8x32xf32>
    %33 = vector.extract_strided_slice %11 {offsets = [3, 0], sizes = [1, 32], strides = [1, 1]} : vector<5x32xf32> to vector<1x32xf32>
    %34 = vector.shape_cast %33 : vector<1x32xf32> to vector<32xf32>
    %35 = vector.shape_cast %34 : vector<32xf32> to vector<1x32xf32>
    %36 = vector.broadcast %35 : vector<1x32xf32> to vector<8x32xf32>
    %37 = arith.mulf %32, %36 : vector<8x32xf32>
    %38 = arith.addf %31, %37 : vector<8x32xf32>
    %c4 = arith.constant 4 : index
    %c0_18 = arith.constant 0 : index
    %39 = vector.load %arg6[%c4, %c0_18] : memref<12x32xf32, #tpu.memory_space<vmem>>, vector<8x32xf32>
    %40 = vector.extract_strided_slice %11 {offsets = [4, 0], sizes = [1, 32], strides = [1, 1]} : vector<5x32xf32> to vector<1x32xf32>
    %41 = vector.shape_cast %40 : vector<1x32xf32> to vector<32xf32>
    %42 = vector.shape_cast %41 : vector<32xf32> to vector<1x32xf32>
    %43 = vector.broadcast %42 : vector<1x32xf32> to vector<8x32xf32>
    %44 = arith.mulf %39, %43 : vector<8x32xf32>
    %45 = arith.addf %38, %44 : vector<8x32xf32>
    %46 = vector.broadcast %3 : vector<8x1xf32> to vector<8x32xf32>
    %47 = arith.mulf %45, %46 : vector<8x32xf32>
    %c0_19 = arith.constant 0 : index
    %c0_20 = arith.constant 0 : index
    %c0_21 = arith.constant 0 : index
    %48 = vector.load %arg5[%c0_19, %c0_20, %c0_21] : memref<1x8x32xf32, #tpu.memory_space<vmem>>, vector<1x8x32xf32>
    %49 = vector.shape_cast %48 : vector<1x8x32xf32> to vector<8x32xf32>
    %50 = vector.shape_cast %47 : vector<8x32xf32> to vector<1x8x32xf32>
    tpu.vector_store %arg5[%c0_19, %c0_20, %c0_21], %50 {strides = array<i32>} : memref<1x8x32xf32, #tpu.memory_space<vmem>>, vector<1x8x32xf32>,
    return
  }
  func.func @transform_0(%arg0: i32, %arg1: i32) -> (i32, i32, i32) {
    %c0_i32 = arith.constant 0 : i32
    %c0_i32_0 = arith.constant 0 : i32
    return %arg0, %c0_i32, %arg1 : i32, i32, i32
  }
  func.func @transform_1(%arg0: i32, %arg1: i32) -> (i32, i32, i32) {
    %c0_i32 = arith.constant 0 : i32
    %c0_i32_0 = arith.constant 0 : i32
    %c0_i32_1 = arith.constant 0 : i32
    return %arg0, %c0_i32, %c0_i32_0 : i32, i32, i32
  }
  func.func @transform_2(%arg0: i32, %arg1: i32) -> (i32, i32) {
    %c0_i32 = arith.constant 0 : i32
    %c0_i32_0 = arith.constant 0 : i32
    return %c0_i32, %arg1 : i32, i32
  }
  func.func @transform_3(%arg0: i32, %arg1: i32) -> (i32, i32, i32) {
    %c0_i32 = arith.constant 0 : i32
    %c0_i32_0 = arith.constant 0 : i32
    return %arg0, %c0_i32, %arg1 : i32, i32, i32
  }
}

</mosaic_0001>

<llo_original>
// kernel: tpu_custom_call.1
$region0: #{tpu_custom_call.1}
  #allocation0 [shape = 'u32[]', space=smem, size = 0x4, offset = 0x4, fixed_abs, tag = 'smem constant byte address 0x4 - core index']
  #allocation1 [shape = 'u32[72,128]{1,0:T(1,128)}', space=vmem, size = 0x9000, scoped, tag = 'internal scratch']
  #allocation2 [shape = 'f32[12,32]{1,0:T(8,128)}', space=vmem, size = 0x2000, scoped, tag = 'scratch operand']
  %s0 = inlined_call_operand.vmem [shape: f32[2,8,32], index: 0, kind: input, shape index: {}]
  %s1 = inlined_call_operand.vmem [shape: f32[2,8,1], index: 1, kind: input, shape index: {}]
  %s2 = inlined_call_operand.hbm [shape: f32[5,32], index: 2, kind: input, shape index: {}]
  %s3 = inlined_call_operand.hbm [shape: f32[2,8,32], index: 3, kind: output, shape index: {}]
  %s4 = sld [smem:[#allocation0]]
  $region49: #{tpu_custom_call.1} parent=0
    _
  %s6 = ssub.s32 1, %s4
  %s7 = scalar_select 0, %s6, %s4
  $region1: #{tpu_custom_call.1} parent=0
    #allocation3 [shape = 'u8[4096]{0}', space=vmem, size = 0x1000, scoped, tag = 'input window, operand 2, single buffered']
    #allocation4 [shape = 's32[2]{0}', space=sflag, size = 0x8, scoped, tag = 'scoped memory for tpu_custom_call.1']
    #allocation5 [shape = 's32[2]{0}', space=sflag, size = 0x8, scoped, tag = 'scoped memory for tpu_custom_call.1']
    #allocation6 [shape = 'u8[8192]{0}', space=vmem, size = 0x2000, scoped, tag = 'output window, operand 0']
    %8 = vsyncpa [#allocation4], 0
    %9 = vsyncpa [#allocation5], 0
    %s10 = scalar_lea.sflag [#allocation5], 1
    %11 = vsyncpa %s10, 0
    loop: start=0, step=1, limit=4
    $region2: #{tpu_custom_call.1} parent=1 // loop_pre_header
      _
    $region3: #{tpu_custom_call.1} parent=1 // loop_header
      %s13 = sphi 0, %s17
      %p14 = scmp.ge.s32.totalorder %s13, 4
      %s20 = sphi 0, %s32
      %s21 = sphi 0, %s28
      %s22 = sphi 0, %s20
      %s23 = sphi 0, %s21
      %s24 = sphi 0, %s22
      %s25 = sphi 0, %s23
      %s37 = sphi 0, %s39
      %s40 = sphi 0, %s37
      %s41 = sphi 0, %s40
      %s57 = sphi 0, %s41
      %s63 = sphi 0, %s65
      %s66 = sphi 0, %s63
      %s67 = sphi 0, %s66
      %s83 = sphi 0, %s67
      %s89 = sphi 0, %s91
      %s92 = sphi 0, %s89
      %s93 = sphi 0, %s92
      %s109 = sphi 0, %s93
      %s117 = sphi 0, %s119
      %s120 = sphi 0, %s117
      %s121 = sphi 0, %s120
      %s137 = sphi 0, %s121
    $region4: #{tpu_custom_call.1} parent=1 // loop_header_branch
      %16 = sbr.rel (%p14) target = $region8
    $region5: #{tpu_custom_call.1} parent=1 // loop_body
      %s18 = ssub.s32 %s13, 1
      %s19 = ssub.s32 %s13, 2
      %s26 = sadd.s32 1, %s21
      %p27 = scmp.ge.s32.totalorder %s26, 1
      %s28 = scalar_select %p27, 0, %s26
      %s29 = sadd.s32 1, %s20
      %s30 = scalar_select %p27, %s29, %s20
      %p31 = scmp.ge.s32.totalorder %s30, 2
      %s32 = scalar_select %p31, 0, %s30
      %s33 = ssub.s32 %s20, %s32
      %s34 = ssub.s32 %s21, %s28
      %s35 = sor.u32 %s33, %s34
      %p36 = scmp.eq.s32.totalorder %s35, 0
      %s38 = sadd.s32 %s37, 1
      %s39 = scalar_select %p36, %s37, %s38
      %p42 = pneg %p36
      %p43 = scmp.eq.s32.totalorder %s13, 1
      %p44 = por %p42, %p43
      %p45 = scmp.ne.s32.totalorder %s37, %s40
      %p46 = scmp.eq.s32.totalorder %s13, 0
      %p47 = por %p45, %p46
      %p48 = scmp.ne.s32.totalorder %s37, %s40
      %p49 = scmp.eq.s32.totalorder %s18, 1
      %p50 = por %p48, %p49
      %p51 = scmp.ne.s32.totalorder %s40, %s41
      %p52 = scmp.eq.s32.totalorder %s18, 0
      %p53 = por %p51, %p52
      %p54 = scmp.ne.s32.totalorder %s40, %s41
      %p55 = scmp.eq.s32.totalorder %s19, 1
      %p56 = por %p54, %p55
      %p58 = scmp.ne.s32.totalorder %s41, %s57
      %p59 = scmp.eq.s32.totalorder %s19, 0
      %p60 = por %p58, %p59
      %s61 = ssub.s32 %s20, %s32
      %p62 = scmp.eq.s32.totalorder %s61, 0
      %s64 = sadd.s32 %s63, 1
      %s65 = scalar_select %p62, %s63, %s64
      %p68 = pneg %p62
      %p69 = scmp.eq.s32.totalorder %s13, 1
      %p70 = por %p68, %p69
      %p71 = scmp.ne.s32.totalorder %s63, %s66
      %p72 = scmp.eq.s32.totalorder %s13, 0
      %p73 = por %p71, %p72
      %p74 = scmp.ne.s32.totalorder %s63, %s66
      %p75 = scmp.eq.s32.totalorder %s18, 1
      %p76 = por %p74, %p75
      %p77 = scmp.ne.s32.totalorder %s66, %s67
      %p78 = scmp.eq.s32.totalorder %s18, 0
      %p79 = por %p77, %p78
      %p80 = scmp.ne.s32.totalorder %s66, %s67
      %p81 = scmp.eq.s32.totalorder %s19, 1
      %p82 = por %p80, %p81
      %p84 = scmp.ne.s32.totalorder %s67, %s83
      %p85 = scmp.eq.s32.totalorder %s19, 0
      %p86 = por %p84, %p85
      %s87 = ssub.s32 %s21, %s28
      %p88 = scmp.eq.s32.totalorder %s87, 0
      %s90 = sadd.s32 %s89, 1
      %s91 = scalar_select %p88, %s89, %s90
      %p94 = pneg %p88
      %p95 = scmp.eq.s32.totalorder %s13, 1
      %p96 = por %p94, %p95
      %p97 = scmp.ne.s32.totalorder %s89, %s92
      %p98 = scmp.eq.s32.totalorder %s13, 0
      %p99 = por %p97, %p98
      %p100 = scmp.ne.s32.totalorder %s89, %s92
      %p101 = scmp.eq.s32.totalorder %s18, 1
      %p102 = por %p100, %p101
      %p103 = scmp.ne.s32.totalorder %s92, %s93
      %p104 = scmp.eq.s32.totalorder %s18, 0
      %p105 = por %p103, %p104
      %p106 = scmp.ne.s32.totalorder %s92, %s93
      %p107 = scmp.eq.s32.totalorder %s19, 1
      %p108 = por %p106, %p107
      %p110 = scmp.ne.s32.totalorder %s93, %s109
      %p111 = scmp.eq.s32.totalorder %s19, 0
      %p112 = por %p110, %p111
      %s113 = ssub.s32 %s20, %s32
      %s114 = ssub.s32 %s21, %s28
      %s115 = sor.u32 %s113, %s114
      %p116 = scmp.eq.s32.totalorder %s115, 0
      %s118 = sadd.s32 %s117, 1
      %s119 = scalar_select %p116, %s117, %s118
      %p122 = pneg %p116
      %p123 = scmp.eq.s32.totalorder %s13, 1
      %p124 = por %p122, %p123
      %p125 = scmp.ne.s32.totalorder %s117, %s120
      %p126 = scmp.eq.s32.totalorder %s13, 0
      %p127 = por %p125, %p126
      %p128 = scmp.ne.s32.totalorder %s117, %s120
      %p129 = scmp.eq.s32.totalorder %s18, 1
      %p130 = por %p128, %p129
      %p131 = scmp.ne.s32.totalorder %s120, %s121
      %p132 = scmp.eq.s32.totalorder %s18, 0
      %p133 = por %p131, %p132
      %p134 = scmp.ne.s32.totalorder %s120, %s121
      %p135 = scmp.eq.s32.totalorder %s19, 1
      %p136 = por %p134, %p135
      %p138 = scmp.ne.s32.totalorder %s121, %s137
      %p139 = scmp.eq.s32.totalorder %s19, 0
      %p140 = por %p138, %p139
      %p141 = scmp.le.s32.totalorder 1, %s13
      %p142 = scmp.lt.s32.totalorder %s13, 3
      %p143 = pnand %p141, %p142
      %p144 = pneg %p143
      // Predicated region
      $region9: #{tpu_custom_call.1} parent=5 // pred_check
        _
      $region10: #{tpu_custom_call.1} parent=5 // pred_check_branch
        %146 = sbr.rel (%p143) target = $region12
      $region11: #{tpu_custom_call.1} parent=5 // pred_region
        %s147 = ssub.s32 %s13, 1
        // Predicated region
        $region13: #{tpu_custom_call.1} parent=11 // pred_check
          %p148 = pneg %p105
        $region14: #{tpu_custom_call.1} parent=11 // pred_check_branch
          %150 = sbr.rel (%p148) target = $region16
        $region15: #{tpu_custom_call.1} parent=11 // pred_region
          %152 = vsyncadd [#allocation4], 0
          %s153 = smul.addr %s23, 8
          %s154 = scalar_lea.hbm %s2, %s153
          %s156 = sshll.u32 %s154, 4
          %s157 = int_to_ptr.hbm [resolvable:$true] %s156
          %s158 = sshll.u32 [#allocation3], 4
          %s159 = int_to_ptr.vmem [resolvable:$true] %s158
          %161 = dma.hbm_to_vmem [thread:$0]  %s157, 128, %s159, [#allocation4]
        $region16: #{tpu_custom_call.1} parent=11 // pred_fallthru
          _
      $region12: #{tpu_custom_call.1} parent=5 // pred_fallthru
        _
      %p162 = scmp.lt.s32.totalorder %s13, 2
      // Predicated region
      $region17: #{tpu_custom_call.1} parent=5 // pred_check
        %p163 = pneg %p162
      $region18: #{tpu_custom_call.1} parent=5 // pred_check_branch
        %165 = sbr.rel (%p163) target = $region20
      $region19: #{tpu_custom_call.1} parent=5 // pred_region
        // Predicated region
        $region21: #{tpu_custom_call.1} parent=19 // pred_check
          %p166 = pneg %p47
        $region22: #{tpu_custom_call.1} parent=19 // pred_check_branch
          %168 = sbr.rel (%p166) target = $region24
        $region23: #{tpu_custom_call.1} parent=19 // pred_region
          %p169 = scmp.lt.s32.totalorder %s20, 1
          %s170 = scalar_select %p169, %s20, 1
          %p171 = scmp.lt.s32.totalorder %s21, 0
          %s172 = scalar_select %p171, %s21, 0
          %s173 = sadd.s32 %s172, %s170
          %s174 = smul.addr %s173, 8
          %s175 = scalar_lea.vmem %s0, %s174
        $region24: #{tpu_custom_call.1} parent=19 // pred_fallthru
          _
        // Predicated region
        $region25: #{tpu_custom_call.1} parent=19 // pred_check
          %p176 = pneg %p73
        $region26: #{tpu_custom_call.1} parent=19 // pred_check_branch
          %178 = sbr.rel (%p176) target = $region28
        $region27: #{tpu_custom_call.1} parent=19 // pred_region
          %p179 = scmp.lt.s32.totalorder %s20, 1
          %s180 = scalar_select %p179, %s20, 1
          %s181 = smul.addr %s180, 8
          %s182 = scalar_lea.vmem %s1, %s181
        $region28: #{tpu_custom_call.1} parent=19 // pred_fallthru
          _
      $region20: #{tpu_custom_call.1} parent=5 // pred_fallthru
        _
      %p183 = scmp.le.s32.totalorder 1, %s13
      %p184 = scmp.lt.s32.totalorder %s13, 3
      %p185 = pnand %p183, %p184
      %p186 = pneg %p185
      // Predicated region
      $region29: #{tpu_custom_call.1} parent=5 // pred_check
        _
      $region30: #{tpu_custom_call.1} parent=5 // pred_check_branch
        %188 = sbr.rel (%p185) target = $region32
      $region31: #{tpu_custom_call.1} parent=5 // pred_region
        %s189 = ssub.s32 %s13, 1
        // Predicated region
        $region33: #{tpu_custom_call.1} parent=31 // pred_check
          %p190 = pneg %p105
        $region34: #{tpu_custom_call.1} parent=31 // pred_check_branch
          %192 = sbr.rel (%p190) target = $region36
        $region35: #{tpu_custom_call.1} parent=31 // pred_region
          %194 = dma.done [#allocation4], 128
        $region36: #{tpu_custom_call.1} parent=31 // pred_fallthru
          _
        %p195 = scmp.lt.s32.totalorder %s22, 1
        %s196 = scalar_select %p195, %s22, 1
        %p197 = scmp.lt.s32.totalorder %s23, 0
        %s198 = scalar_select %p197, %s23, 0
        %s199 = sadd.s32 %s198, %s196
        %s200 = smul.addr %s199, 8
        %s201 = scalar_lea.vmem %s0, %s200
        %p202 = pneg %p53
        %p203 = pneg %p50
        %p204 = scmp.lt.s32.totalorder %s22, 1
        %s205 = scalar_select %p204, %s22, 1
        %s206 = smul.addr %s205, 8
        %s207 = scalar_lea.vmem %s1, %s206
        %p208 = pneg %p79
        %p209 = pneg %p76
        %p210 = pneg %p105
        %p211 = pneg %p102
        %p212 = pneg %p133
        %p213 = pneg %p130
        %s214 = sand.u32 %s120, 1
        %s215 = scalar_lea.sflag [#allocation5], %s214
        %s216 = sand.u32 %s120, 1
        %s217 = smul.addr %s216, 8
        %s218 = scalar_lea.vmem [#allocation6], %s217
        %p219 = scmp.lt.s32.totalorder %s22, 1
        %s220 = scalar_select %p219, %s22, 1
        %p221 = scmp.lt.s32.totalorder %s23, 0
        %s222 = scalar_select %p221, %s23, 0
        %s223 = sadd.s32 %s222, %s220
        %s224 = smul.addr %s223, 8
        %s225 = scalar_lea.vmem %s0, %s224
        %p226 = scmp.lt.s32.totalorder %s22, 1
        %s227 = scalar_select %p226, %s22, 1
        %s228 = smul.addr %s227, 8
        %s229 = scalar_lea.vmem %s1, %s228
        %v230 = vld [vmem:[%s225] sm:$0xff]
        %v231 = vld [vmem:[%s229] sm:$0xff]
        %233 = vset.pattern.permute.xlu0 0
        %234 = vperm.xlu0 %233, %v231
        %v235 = vpop.permute.xlu0 %234
        %v237 = vmul.f32 %v230, %v235
        %vm238 = vcmask 254976
        %239 = vst.msk [vmem:[#allocation2] sm:$0x3] %vm238, 0.0
        %240 = vst.msk [vmem:[#allocation2 + $0xa] sm:$0x3] %vm238, 0.0
        %vm241 = vcmask 261120
        %242 = vst.msk [vmem:[#allocation2 + $0x2] sm:$0xff] %vm241, %v237
        %v243 = vld [vmem:[#allocation3] sm:$0x1f]
        %v244 = vld [vmem:[#allocation2] sm:$0xff]
        %v245 = vperm.slane %v243, 0
        %v246 = vmul.f32 %v244, %v245
        %v247 = vld [vmem:[#allocation2 + $0x1] sm:$0xff]
        %v248 = vperm.slane %v243, 1
        %v249 = vmul.f32 %v247, %v248
        %v250 = vadd.f32 %v246, %v249
        %v251 = vld [vmem:[#allocation2 + $0x2] sm:$0xff]
        %v252 = vperm.slane %v243, 2
        %v253 = vmul.f32 %v251, %v252
        %v254 = vadd.f32 %v250, %v253
        %v255 = vld [vmem:[#allocation2 + $0x3] sm:$0xff]
        %v256 = vperm.slane %v243, 3
        %v257 = vmul.f32 %v255, %v256
        %v258 = vadd.f32 %v254, %v257
        %v259 = vld [vmem:[#allocation2 + $0x4] sm:$0xff]
        %v260 = vperm.slane %v243, 4
        %v261 = vmul.f32 %v259, %v260
        %v262 = vadd.f32 %v258, %v261
        %v263 = vmul.f32 %v262, %v235
        %264 = vst.msk [vmem:[%s218] sm:$0xff] %vm241, %v263
        %s265 = sand.u32 %s120, 1
        %s266 = scalar_lea.sflag [#allocation5], %s265
        %s267 = sand.u32 %s120, 1
        %s268 = smul.addr %s267, 8
        %s269 = scalar_lea.vmem [#allocation6], %s268
        // Predicated region
        $region37: #{tpu_custom_call.1} parent=31 // pred_check
          %p270 = pneg %p130
        $region38: #{tpu_custom_call.1} parent=31 // pred_check_branch
          %272 = sbr.rel (%p270) target = $region40
        $region39: #{tpu_custom_call.1} parent=31 // pred_region
          %274 = vsyncadd %s266, 0
          %s275 = sadd.s32 %s23, %s22
          %s276 = smul.addr %s275, 8
          %s277 = scalar_lea.hbm %s3, %s276
          %s279 = sshll.u32 %s269, 4
          %s280 = int_to_ptr.vmem [resolvable:$true] %s279
          %s281 = sshll.u32 %s277, 4
          %s282 = int_to_ptr.hbm [resolvable:$true] %s281
          %284 = dma.vmem_to_hbm [thread:$0]  %s280, 128, %s282, %s266
        $region40: #{tpu_custom_call.1} parent=31 // pred_fallthru
          _
      $region32: #{tpu_custom_call.1} parent=5 // pred_fallthru
        _
      %p285 = scmp.le.s32.totalorder 2, %s13
      // Predicated region
      $region41: #{tpu_custom_call.1} parent=5 // pred_check
        %p286 = pneg %p285
      $region42: #{tpu_custom_call.1} parent=5 // pred_check_branch
        %288 = sbr.rel (%p286) target = $region44
      $region43: #{tpu_custom_call.1} parent=5 // pred_region
        %s289 = ssub.s32 %s13, 2
        // Predicated region
        $region45: #{tpu_custom_call.1} parent=43 // pred_check
          %p290 = pneg %p136
        $region46: #{tpu_custom_call.1} parent=43 // pred_check_branch
          %292 = sbr.rel (%p290) target = $region48
        $region47: #{tpu_custom_call.1} parent=43 // pred_region
          %s293 = sand.u32 %s121, 1
          %s294 = scalar_lea.sflag [#allocation5], %s293
          %s295 = sand.u32 %s121, 1
          %s296 = smul.addr %s295, 8
          %s297 = scalar_lea.vmem [#allocation6], %s296
          %299 = dma.done %s294, 128
        $region48: #{tpu_custom_call.1} parent=43 // pred_fallthru
          _
      $region44: #{tpu_custom_call.1} parent=5 // pred_fallthru
        _
    $region6: #{tpu_custom_call.1} parent=1 // loop_footer
      %s17 = sadd.s32 1, %s13
    $region7: #{tpu_custom_call.1} parent=1 // loop_footer_branch
      %12 = sbr.rel target = $region3
    $region8: #{tpu_custom_call.1} parent=1 // loop_exit
      _
    %300 = vsyncpa [#allocation4], 1
    %s301 = scalar_lea.sflag [#allocation4], 1
    %302 = vsyncpa %s301, 1
    %303 = vsyncpa [#allocation5], 1
    %s304 = scalar_lea.sflag [#allocation5], 1
    %305 = vsyncpa %s304, 1

</llo_original>
